<compile_context>
chip_gen: v6e
topology: v6e:2x2x1
jax: 0.10.0
libtpu: 0.0.40
codegen_flags: <defaults>
</compile_context>

<pallas_src>
import jax
import jax.numpy as jnp
from jax.experimental import pallas as pl
from jax.experimental.pallas import tpu as pltpu

# Module hyperparameters (hidden2_size / hidden3_size are undefined globals in
# the original script; fixed deterministically here).
INPUT_SIZE = 32
HIDDEN_SIZE = 64
HIDDEN2_SIZE = 48
HIDDEN3_SIZE = 40
NUM_CLASSES = 10
BATCH = 16

PAD = 128  # lane-friendly padded feature width for the hidden layers


def _round_up(n, m):
    return (n + m - 1) // m * m


def _mlp_kernel(x_ref, w_ref, b_ref, o_ref):
    # x_ref: (tile_b, INPUT_SIZE) f32
    # w_ref: (4, PAD, PAD) f32  pre-transposed [in, out], zero padded
    # b_ref: (4, 1, PAD)   f32
    # o_ref: (tile_b, NUM_CLASSES) f32
    x = x_ref[...]

    # fc1 + relu: contract only the real INPUT_SIZE rows of the padded weight.
    w0 = w_ref[0][:INPUT_SIZE, :]
    h = jnp.dot(x, w0, preferred_element_type=jnp.float32)
    h = jnp.maximum(h + b_ref[0], 0.0)

    # fc2 + relu (padded hidden lanes are exactly 0, so full-width contraction
    # is exact).
    h = jnp.dot(h, w_ref[1], preferred_element_type=jnp.float32)
    h = jnp.maximum(h + b_ref[1], 0.0)

    # fc3 + relu
    h = jnp.dot(h, w_ref[2], preferred_element_type=jnp.float32)
    h = jnp.maximum(h + b_ref[2], 0.0)

    # fc4 (no activation); narrow store of only the real NUM_CLASSES lanes.
    h = jnp.dot(h, w_ref[3], preferred_element_type=jnp.float32) + b_ref[3]
    o_ref[...] = h[:, :NUM_CLASSES].astype(o_ref.dtype)


def pack_params(params):
    """Pack PyTorch-layout params (W[out,in], b[out]) into padded, pre-transposed
    VMEM-friendly buffers: w_all[layer, in_pad, out_pad], b_all[layer, 1, out_pad]."""
    dims_out = (HIDDEN_SIZE, HIDDEN2_SIZE, HIDDEN3_SIZE, NUM_CLASSES)
    dims_in = (INPUT_SIZE, HIDDEN_SIZE, HIDDEN2_SIZE, HIDDEN3_SIZE)
    ws, bs = params[0::2], params[1::2]
    w_all = jnp.zeros((4, PAD, PAD), jnp.float32)
    b_all = jnp.zeros((4, 1, PAD), jnp.float32)
    for i, (w, b, di, do) in enumerate(zip(ws, bs, dims_in, dims_out)):
        w_all = w_all.at[i, :di, :do].set(w.T)          # pre-transpose to [in, out]
        b_all = b_all.at[i, 0, :do].set(b.reshape(-1))
    return w_all, b_all


def _choose_tile(B, max_tile_b):
    """Batch tile: multiple of 8 sublanes, capped at max_tile_b, and chosen so
    the grid has >= 2 steps whenever B > 8 (lets v7x use both TensorCores)."""
    if B <= 8:
        return B  # single block equal to the full (tiny) batch dim -> legal
    return min(max_tile_b, _round_up(pl.cdiv(B, 2), 8))


def net_forward(x, packed_params, *, max_tile_b=1024):
    """x: (B, INPUT_SIZE) f32; packed_params = pack_params(raw_params)."""
    w_all, b_all = packed_params
    B, F = x.shape
    assert F == INPUT_SIZE

    tile_b = _choose_tile(B, max_tile_b)
    grid = (pl.cdiv(B, tile_b),)  # ragged last tile is masked by Pallas

    return pl.pallas_call(
        _mlp_kernel,
        out_shape=jax.ShapeDtypeStruct((B, NUM_CLASSES), jnp.float32),
        grid=grid,
        in_specs=[
            # activations stream per batch tile; last dim == full array dim (32)
            pl.BlockSpec((tile_b, INPUT_SIZE), lambda i: (i, 0)),
            # weights / biases: constant index_map -> DMA'd once, VMEM-resident
            pl.BlockSpec((4, PAD, PAD), lambda i: (0, 0, 0)),
            pl.BlockSpec((4, 1, PAD), lambda i: (0, 0, 0)),
        ],
        # narrow output block; last dim == full array dim (NUM_CLASSES)
        out_specs=pl.BlockSpec((tile_b, NUM_CLASSES), lambda i: (i, 0)),
        compiler_params=pltpu.CompilerParams(
            dimension_semantics=("parallel",)),  # v7x: shard batch tiles over 2 TCs
    )(x, w_all, b_all)


def init_params(key):
    """Deterministic init matching PyTorch Linear shapes: W[out, in], b[out]."""
    ks = jax.random.split(key, 8)

    def lin(kw, kb, fan_in, fan_out):
        bound = 1.0 / jnp.sqrt(fan_in)
        w = jax.random.uniform(kw, (fan_out, fan_in), jnp.float32, -bound, bound)
        b = jax.random.uniform(kb, (fan_out,), jnp.float32, -bound, bound)
        return w, b

    w1, b1 = lin(ks[0], ks[1], INPUT_SIZE, HIDDEN_SIZE)
    w2, b2 = lin(ks[2], ks[3], HIDDEN_SIZE, HIDDEN2_SIZE)
    w3, b3 = lin(ks[4], ks[5], HIDDEN2_SIZE, HIDDEN3_SIZE)
    w4, b4 = lin(ks[6], ks[7], HIDDEN3_SIZE, NUM_CLASSES)
    return (w1, b1, w2, b2, w3, b3, w4, b4)


if __name__ == "__main__":
    # Note: at BATCH=16 this is one-to-two grid steps and dispatch overhead
    # dominates; the tiling levers above pay off for B in the thousands.
    key = jax.random.PRNGKey(0)
    kx, kp = jax.random.split(key)
    x = jax.random.normal(kx, (BATCH, INPUT_SIZE), jnp.float32)
    params = init_params(kp)
    packed = pack_params(params)

    out = net_forward(x, packed)
    jax.block_until_ready(out)

    # Reference check in plain JAX (original, unpadded math).
    w1, b1, w2, b2, w3, b3, w4, b4 = params
    h = jnp.maximum(x @ w1.T + b1, 0.0)
    h = jnp.maximum(h @ w2.T + b2, 0.0)
    h = jnp.maximum(h @ w3.T + b3, 0.0)
    ref = h @ w4.T + b4

    assert out.shape == (BATCH, NUM_CLASSES)
    assert jnp.allclose(out, ref, atol=1e-4, rtol=1e-4)
    print("KERNEL_OK")
</pallas_src>

<mosaic_0001>
module attributes {stable_mosaic.version = 11 : i64} {
  func.func @_mlp_kernel(%arg0: i32, %arg1: memref<8x32xf32, #tpu.memory_space<vmem>>, %arg2: memref<4x128x128xf32, #tpu.memory_space<vmem>>, %arg3: memref<4x1x128xf32, #tpu.memory_space<vmem>>, %arg4: memref<8x10xf32, #tpu.memory_space<vmem>>) attributes {dimension_semantics = [#tpu.dimension_semantics<parallel>], iteration_bounds = array<i64: 2>, scalar_prefetch = 0 : i64, scratch_operands = 0 : i64, tpu.core_type = #tpu.core_type<tc>, window_params = [{transform_indices = @transform_0, window_bounds = array<i64: 8, 32>}, {pipeline_mode = #tpu.pipeline_mode<synchronous>, transform_indices = @transform_1, window_bounds = array<i64: 4, 128, 128>}, {pipeline_mode = #tpu.pipeline_mode<synchronous>, transform_indices = @transform_2, window_bounds = array<i64: 4, 1, 128>}, {transform_indices = @transform_3, window_bounds = array<i64: 8, 10>}]} {
    %c0 = arith.constant 0 : index
    %c0_0 = arith.constant 0 : index
    %0 = vector.load %arg1[%c0, %c0_0] : memref<8x32xf32, #tpu.memory_space<vmem>>, vector<8x32xf32>
    %c0_1 = arith.constant 0 : index
    %c0_2 = arith.constant 0 : index
    %c0_3 = arith.constant 0 : index
    %1 = vector.load %arg2[%c0_1, %c0_2, %c0_3] : memref<4x128x128xf32, #tpu.memory_space<vmem>>, vector<1x128x128xf32>
    %2 = vector.shape_cast %1 : vector<1x128x128xf32> to vector<128x128xf32>
    %3 = vector.extract_strided_slice %2 {offsets = [0, 0], sizes = [32, 128], strides = [1, 1]} : vector<128x128xf32> to vector<32x128xf32>
    %cst = arith.constant dense<0.000000e+00> : vector<8x128xf32>
    %4 = tpu.matmul %0, %3, %cst {dimension_numbers = #tpu.dot_dimension_numbers<[1], [0], [0], [1], [0, 0, 1, 1], [], []>} : vector<8x32xf32>, vector<32x128xf32>, vector<8x128xf32> -> vector<8x128xf32>
    %c0_4 = arith.constant 0 : index
    %c0_5 = arith.constant 0 : index
    %c0_6 = arith.constant 0 : index
    %5 = vector.load %arg3[%c0_4, %c0_5, %c0_6] : memref<4x1x128xf32, #tpu.memory_space<vmem>>, vector<1x1x128xf32>
    %6 = vector.shape_cast %5 : vector<1x1x128xf32> to vector<1x128xf32>
    %7 = vector.broadcast %6 : vector<1x128xf32> to vector<8x128xf32>
    %8 = arith.addf %4, %7 : vector<8x128xf32>
    %cst_7 = arith.constant 0.000000e+00 : f32
    %9 = vector.broadcast %cst_7 : f32 to vector<8x128xf32>
    %10 = arith.maximumf %8, %9 : vector<8x128xf32>
    %c1 = arith.constant 1 : index
    %c0_8 = arith.constant 0 : index
    %c0_9 = arith.constant 0 : index
    %11 = vector.load %arg2[%c1, %c0_8, %c0_9] : memref<4x128x128xf32, #tpu.memory_space<vmem>>, vector<1x128x128xf32>
    %12 = vector.shape_cast %11 : vector<1x128x128xf32> to vector<128x128xf32>
    %cst_10 = arith.constant dense<0.000000e+00> : vector<8x128xf32>
    %13 = tpu.matmul %10, %12, %cst_10 {dimension_numbers = #tpu.dot_dimension_numbers<[1], [0], [0], [1], [0, 0, 1, 1], [], []>} : vector<8x128xf32>, vector<128x128xf32>, vector<8x128xf32> -> vector<8x128xf32>
    %c1_11 = arith.constant 1 : index
    %c0_12 = arith.constant 0 : index
    %c0_13 = arith.constant 0 : index
    %14 = vector.load %arg3[%c1_11, %c0_12, %c0_13] : memref<4x1x128xf32, #tpu.memory_space<vmem>>, vector<1x1x128xf32>
    %15 = vector.shape_cast %14 : vector<1x1x128xf32> to vector<1x128xf32>
    %16 = vector.broadcast %15 : vector<1x128xf32> to vector<8x128xf32>
    %17 = arith.addf %13, %16 : vector<8x128xf32>
    %cst_14 = arith.constant 0.000000e+00 : f32
    %18 = vector.broadcast %cst_14 : f32 to vector<8x128xf32>
    %19 = arith.maximumf %17, %18 : vector<8x128xf32>
    %c2 = arith.constant 2 : index
    %c0_15 = arith.constant 0 : index
    %c0_16 = arith.constant 0 : index
    %20 = vector.load %arg2[%c2, %c0_15, %c0_16] : memref<4x128x128xf32, #tpu.memory_space<vmem>>, vector<1x128x128xf32>
    %21 = vector.shape_cast %20 : vector<1x128x128xf32> to vector<128x128xf32>
    %cst_17 = arith.constant dense<0.000000e+00> : vector<8x128xf32>
    %22 = tpu.matmul %19, %21, %cst_17 {dimension_numbers = #tpu.dot_dimension_numbers<[1], [0], [0], [1], [0, 0, 1, 1], [], []>} : vector<8x128xf32>, vector<128x128xf32>, vector<8x128xf32> -> vector<8x128xf32>
    %c2_18 = arith.constant 2 : index
    %c0_19 = arith.constant 0 : index
    %c0_20 = arith.constant 0 : index
    %23 = vector.load %arg3[%c2_18, %c0_19, %c0_20] : memref<4x1x128xf32, #tpu.memory_space<vmem>>, vector<1x1x128xf32>
    %24 = vector.shape_cast %23 : vector<1x1x128xf32> to vector<1x128xf32>
    %25 = vector.broadcast %24 : vector<1x128xf32> to vector<8x128xf32>
    %26 = arith.addf %22, %25 : vector<8x128xf32>
    %cst_21 = arith.constant 0.000000e+00 : f32
    %27 = vector.broadcast %cst_21 : f32 to vector<8x128xf32>
    %28 = arith.maximumf %26, %27 : vector<8x128xf32>
    %c3 = arith.constant 3 : index
    %c0_22 = arith.constant 0 : index
    %c0_23 = arith.constant 0 : index
    %29 = vector.load %arg2[%c3, %c0_22, %c0_23] : memref<4x128x128xf32, #tpu.memory_space<vmem>>, vector<1x128x128xf32>
    %30 = vector.shape_cast %29 : vector<1x128x128xf32> to vector<128x128xf32>
    %cst_24 = arith.constant dense<0.000000e+00> : vector<8x128xf32>
    %31 = tpu.matmul %28, %30, %cst_24 {dimension_numbers = #tpu.dot_dimension_numbers<[1], [0], [0], [1], [0, 0, 1, 1], [], []>} : vector<8x128xf32>, vector<128x128xf32>, vector<8x128xf32> -> vector<8x128xf32>
    %c3_25 = arith.constant 3 : index
    %c0_26 = arith.constant 0 : index
    %c0_27 = arith.constant 0 : index
    %32 = vector.load %arg3[%c3_25, %c0_26, %c0_27] : memref<4x1x128xf32, #tpu.memory_space<vmem>>, vector<1x1x128xf32>
    %33 = vector.shape_cast %32 : vector<1x1x128xf32> to vector<1x128xf32>
    %34 = vector.broadcast %33 : vector<1x128xf32> to vector<8x128xf32>
    %35 = arith.addf %31, %34 : vector<8x128xf32>
    %36 = vector.extract_strided_slice %35 {offsets = [0, 0], sizes = [8, 10], strides = [1, 1]} : vector<8x128xf32> to vector<8x10xf32>
    %c0_28 = arith.constant 0 : index
    %c0_29 = arith.constant 0 : index
    %37 = vector.load %arg4[%c0_28, %c0_29] : memref<8x10xf32, #tpu.memory_space<vmem>>, vector<8x10xf32>
    tpu.vector_store %arg4[%c0_28, %c0_29], %36 {strides = array<i32>} : memref<8x10xf32, #tpu.memory_space<vmem>>, vector<8x10xf32>,
    return
  }
  func.func @transform_0(%arg0: i32) -> (i32, i32) {
    %c0_i32 = arith.constant 0 : i32
    %c0_i32_0 = arith.constant 0 : i32
    return %arg0, %c0_i32 : i32, i32
  }
  func.func @transform_1(%arg0: i32) -> (i32, i32, i32) {
    %c0_i32 = arith.constant 0 : i32
    %c0_i32_0 = arith.constant 0 : i32
    %c0_i32_1 = arith.constant 0 : i32
    %c0_i32_2 = arith.constant 0 : i32
    return %c0_i32, %c0_i32_0, %c0_i32_1 : i32, i32, i32
  }
  func.func @transform_2(%arg0: i32) -> (i32, i32, i32) {
    %c0_i32 = arith.constant 0 : i32
    %c0_i32_0 = arith.constant 0 : i32
    %c0_i32_1 = arith.constant 0 : i32
    %c0_i32_2 = arith.constant 0 : i32
    return %c0_i32, %c0_i32_0, %c0_i32_1 : i32, i32, i32
  }
  func.func @transform_3(%arg0: i32) -> (i32, i32) {
    %c0_i32 = arith.constant 0 : i32
    %c0_i32_0 = arith.constant 0 : i32
    return %arg0, %c0_i32 : i32, i32
  }
}

</mosaic_0001>

<llo_original>
// kernel: tpu_custom_call.1
$region0: #{tpu_custom_call.1}
  #allocation0 [shape = 'u32[]', space=smem, size = 0x4, offset = 0x4, fixed_abs, tag = 'smem constant byte address 0x4 - core index']
  #allocation1 [shape = 'u32[144,128]{1,0:T(1,128)}', space=vmem, size = 0x12000, scoped, tag = 'internal scratch']
  %s0 = inlined_call_operand.hbm [shape: f32[16,32], index: 0, kind: input, shape index: {}]
  %s1 = inlined_call_operand.hbm [shape: f32[4,128,128], index: 1, kind: input, shape index: {}]
  %s2 = inlined_call_operand.hbm [shape: f32[4,1,128], index: 2, kind: input, shape index: {}]
  %s3 = inlined_call_operand.hbm [shape: f32[16,10], index: 3, kind: output, shape index: {}]
  %s4 = sld [smem:[#allocation0]]
  $region57: #{tpu_custom_call.1} parent=0
    _
  %s6 = ssub.s32 1, %s4
  %s7 = scalar_select 0, %s6, %s4
  $region1: #{tpu_custom_call.1} parent=0
    #allocation2 [shape = 'u8[8192]{0}', space=vmem, size = 0x2000, scoped, tag = 'input window, operand 0']
    #allocation3 [shape = 's32[2]{0}', space=sflag, size = 0x8, scoped, tag = 'scoped memory for tpu_custom_call.1']
    #allocation4 [shape = 's32[2]{0}', space=sflag, size = 0x8, scoped, tag = 'scoped memory for tpu_custom_call.1']
    #allocation5 [shape = 'u8[262144]{0}', space=vmem, size = 0x40000, scoped, tag = 'input window, operand 1, single buffered']
    #allocation6 [shape = 's32[1]{0}', space=sflag, size = 0x4, scoped, tag = 'scoped memory for tpu_custom_call.1']
    #allocation7 [shape = 'u8[2048]{0}', space=vmem, size = 0x800, scoped, tag = 'input window, operand 2, single buffered']
    #allocation8 [shape = 'u8[8192]{0}', space=vmem, size = 0x2000, scoped, tag = 'output window, operand 0']
    %8 = vsyncpa [#allocation3], 0
    %s9 = scalar_lea.sflag [#allocation3], 1
    %10 = vsyncpa %s9, 0
    %11 = vsyncpa [#allocation6], 0
    %12 = vsyncpa [#allocation4], 0
    %s13 = scalar_lea.sflag [#allocation4], 1
    %14 = vsyncpa %s13, 0
    loop: start=0, step=1, limit=4
    $region2: #{tpu_custom_call.1} parent=1 // loop_pre_header
      _
    $region3: #{tpu_custom_call.1} parent=1 // loop_header
      %s16 = sphi 0, %s20
      %p17 = scmp.ge.s32.totalorder %s16, 4
      %s26 = sphi 0, %s28
      %s29 = sphi 0, %s26
      %s30 = sphi 0, %s29
      %s46 = sphi 0, %s30
      %s50 = sphi 0, %s50
      %s52 = sphi 0, %s50
      %s53 = sphi 0, %s52
      %s67 = sphi 0, %s53
      %s71 = sphi 0, %s71
      %s73 = sphi 0, %s71
      %s74 = sphi 0, %s73
      %s88 = sphi 0, %s74
      %s94 = sphi 0, %s96
      %s97 = sphi 0, %s94
      %s98 = sphi 0, %s97
      %s114 = sphi 0, %s98
    $region4: #{tpu_custom_call.1} parent=1 // loop_header_branch
      %19 = sbr.rel (%p17) target = $region8
    $region5: #{tpu_custom_call.1} parent=1 // loop_body
      %s21 = ssub.s32 %s16, 1
      %s22 = ssub.s32 %s16, 2
      %s23 = sadd.s32 %s16, 1
      %s24 = ssub.s32 %s16, %s23
      %p25 = scmp.eq.s32.totalorder %s24, 0
      %s27 = sadd.s32 %s26, 1
      %s28 = scalar_select %p25, %s26, %s27
      %p31 = pneg %p25
      %p32 = scmp.eq.s32.totalorder %s16, 1
      %p33 = por %p31, %p32
      %p34 = scmp.ne.s32.totalorder %s26, %s29
      %p35 = scmp.eq.s32.totalorder %s16, 0
      %p36 = por %p34, %p35
      %p37 = scmp.ne.s32.totalorder %s26, %s29
      %p38 = scmp.eq.s32.totalorder %s21, 1
      %p39 = por %p37, %p38
      %p40 = scmp.ne.s32.totalorder %s29, %s30
      %p41 = scmp.eq.s32.totalorder %s21, 0
      %p42 = por %p40, %p41
      %p43 = scmp.ne.s32.totalorder %s29, %s30
      %p44 = scmp.eq.s32.totalorder %s22, 1
      %p45 = por %p43, %p44
      %p47 = scmp.ne.s32.totalorder %s30, %s46
      %p48 = scmp.eq.s32.totalorder %s22, 0
      %p49 = por %p47, %p48
      %s51 = sadd.s32 %s50, 1
      %p54 = scmp.eq.s32.totalorder %s16, 1
      %p55 = scmp.ne.s32.totalorder %s50, %s52
      %p56 = scmp.eq.s32.totalorder %s16, 0
      %p57 = por %p55, %p56
      %p58 = scmp.ne.s32.totalorder %s50, %s52
      %p59 = scmp.eq.s32.totalorder %s21, 1
      %p60 = por %p58, %p59
      %p61 = scmp.ne.s32.totalorder %s52, %s53
      %p62 = scmp.eq.s32.totalorder %s21, 0
      %p63 = por %p61, %p62
      %p64 = scmp.ne.s32.totalorder %s52, %s53
      %p65 = scmp.eq.s32.totalorder %s22, 1
      %p66 = por %p64, %p65
      %p68 = scmp.ne.s32.totalorder %s53, %s67
      %p69 = scmp.eq.s32.totalorder %s22, 0
      %p70 = por %p68, %p69
      %s72 = sadd.s32 %s71, 1
      %p75 = scmp.eq.s32.totalorder %s16, 1
      %p76 = scmp.ne.s32.totalorder %s71, %s73
      %p77 = scmp.eq.s32.totalorder %s16, 0
      %p78 = por %p76, %p77
      %p79 = scmp.ne.s32.totalorder %s71, %s73
      %p80 = scmp.eq.s32.totalorder %s21, 1
      %p81 = por %p79, %p80
      %p82 = scmp.ne.s32.totalorder %s73, %s74
      %p83 = scmp.eq.s32.totalorder %s21, 0
      %p84 = por %p82, %p83
      %p85 = scmp.ne.s32.totalorder %s73, %s74
      %p86 = scmp.eq.s32.totalorder %s22, 1
      %p87 = por %p85, %p86
      %p89 = scmp.ne.s32.totalorder %s74, %s88
      %p90 = scmp.eq.s32.totalorder %s22, 0
      %p91 = por %p89, %p90
      %s92 = ssub.s32 %s16, %s23
      %p93 = scmp.eq.s32.totalorder %s92, 0
      %s95 = sadd.s32 %s94, 1
      %s96 = scalar_select %p93, %s94, %s95
      %p99 = pneg %p93
      %p100 = scmp.eq.s32.totalorder %s16, 1
      %p101 = por %p99, %p100
      %p102 = scmp.ne.s32.totalorder %s94, %s97
      %p103 = scmp.eq.s32.totalorder %s16, 0
      %p104 = por %p102, %p103
      %p105 = scmp.ne.s32.totalorder %s94, %s97
      %p106 = scmp.eq.s32.totalorder %s21, 1
      %p107 = por %p105, %p106
      %p108 = scmp.ne.s32.totalorder %s97, %s98
      %p109 = scmp.eq.s32.totalorder %s21, 0
      %p110 = por %p108, %p109
      %p111 = scmp.ne.s32.totalorder %s97, %s98
      %p112 = scmp.eq.s32.totalorder %s22, 1
      %p113 = por %p111, %p112
      %p115 = scmp.ne.s32.totalorder %s98, %s114
      %p116 = scmp.eq.s32.totalorder %s22, 0
      %p117 = por %p115, %p116
      %p118 = scmp.le.s32.totalorder 1, %s16
      %p119 = scmp.lt.s32.totalorder %s16, 3
      %p120 = pnand %p118, %p119
      %p121 = pneg %p120
      // Predicated region
      $region9: #{tpu_custom_call.1} parent=5 // pred_check
        _
      $region10: #{tpu_custom_call.1} parent=5 // pred_check_branch
        %123 = sbr.rel (%p120) target = $region12
      $region11: #{tpu_custom_call.1} parent=5 // pred_region
        %s124 = ssub.s32 %s16, 1
        // Predicated region
        $region13: #{tpu_custom_call.1} parent=11 // pred_check
          %p125 = pneg %p63
        $region14: #{tpu_custom_call.1} parent=11 // pred_check_branch
          %127 = sbr.rel (%p125) target = $region16
        $region15: #{tpu_custom_call.1} parent=11 // pred_region
          %s129 = ssub.s32 8192, 8192
          %130 = vsyncadd [#allocation6], %s129
          %s131 = sshll.u32 [#allocation5], 4
          %s132 = int_to_ptr.vmem [resolvable:$true] %s131
          %137 = dma.hbm_to_vmem [thread:$0]  %s1, 8192, %s132, [#allocation6], 128, 128, 8
        $region16: #{tpu_custom_call.1} parent=11 // pred_fallthru
          _
        // Predicated region
        $region17: #{tpu_custom_call.1} parent=11 // pred_check
          %p138 = pneg %p84
        $region18: #{tpu_custom_call.1} parent=11 // pred_check_branch
          %140 = sbr.rel (%p138) target = $region20
        $region19: #{tpu_custom_call.1} parent=11 // pred_region
          %s142 = ssub.s32 64, 64
          %143 = vsyncadd [#allocation6], %s142
          %s144 = sshll.u32 [#allocation7], 4
          %s145 = int_to_ptr.vmem [resolvable:$true] %s144
          %150 = dma.hbm_to_vmem [thread:$0]  %s2, 64, %s145, [#allocation6], 16, 16, 1
        $region20: #{tpu_custom_call.1} parent=11 // pred_fallthru
          _
      $region12: #{tpu_custom_call.1} parent=5 // pred_fallthru
        _
      %p151 = scmp.lt.s32.totalorder %s16, 2
      // Predicated region
      $region21: #{tpu_custom_call.1} parent=5 // pred_check
        %p152 = pneg %p151
      $region22: #{tpu_custom_call.1} parent=5 // pred_check_branch
        %154 = sbr.rel (%p152) target = $region24
      $region23: #{tpu_custom_call.1} parent=5 // pred_region
        // Predicated region
        $region25: #{tpu_custom_call.1} parent=23 // pred_check
          %p155 = pneg %p36
        $region26: #{tpu_custom_call.1} parent=23 // pred_check_branch
          %157 = sbr.rel (%p155) target = $region28
        $region27: #{tpu_custom_call.1} parent=23 // pred_region
          %s158 = sand.u32 %s26, 1
          %s159 = scalar_lea.sflag [#allocation3], %s158
          %s160 = sand.u32 %s26, 1
          %s161 = smul.addr %s160, 8
          %s162 = scalar_lea.vmem [#allocation2], %s161
          %s164 = ssub.s32 128, 128
          %165 = vsyncadd %s159, %s164
          %s166 = smul.addr %s16, 128
          %s167 = scalar_lea.hbm %s0, %s166
          %s169 = sshll.u32 %s162, 4
          %s170 = int_to_ptr.vmem [resolvable:$true] %s169
          %172 = dma.hbm_to_vmem [thread:$0]  %s167, 128, %s170, %s159
        $region28: #{tpu_custom_call.1} parent=23 // pred_fallthru
          _
      $region24: #{tpu_custom_call.1} parent=5 // pred_fallthru
        _
      %p173 = scmp.le.s32.totalorder 1, %s16
      %p174 = scmp.lt.s32.totalorder %s16, 3
      %p175 = pnand %p173, %p174
      %p176 = pneg %p175
      // Predicated region
      $region29: #{tpu_custom_call.1} parent=5 // pred_check
        _
      $region30: #{tpu_custom_call.1} parent=5 // pred_check_branch
        %178 = sbr.rel (%p175) target = $region32
      $region31: #{tpu_custom_call.1} parent=5 // pred_region
        %s179 = ssub.s32 %s16, 1
        %s180 = sand.u32 %s29, 1
        %s181 = scalar_lea.sflag [#allocation3], %s180
        %s182 = sand.u32 %s29, 1
        %s183 = smul.addr %s182, 8
        %s184 = scalar_lea.vmem [#allocation2], %s183
        // Predicated region
        $region33: #{tpu_custom_call.1} parent=31 // pred_check
          %p185 = pneg %p42
        $region34: #{tpu_custom_call.1} parent=31 // pred_check_branch
          %187 = sbr.rel (%p185) target = $region36
        $region35: #{tpu_custom_call.1} parent=31 // pred_region
          %188 = dma.done %s181, 128
        $region36: #{tpu_custom_call.1} parent=31 // pred_fallthru
          _
        // Predicated region
        $region37: #{tpu_custom_call.1} parent=31 // pred_check
          %p189 = pneg %p63
        $region38: #{tpu_custom_call.1} parent=31 // pred_check_branch
          %191 = sbr.rel (%p189) target = $region40
        $region39: #{tpu_custom_call.1} parent=31 // pred_region
          %192 = dma.done [#allocation6], 8192
        $region40: #{tpu_custom_call.1} parent=31 // pred_fallthru
          _
        // Predicated region
        $region41: #{tpu_custom_call.1} parent=31 // pred_check
          %p193 = pneg %p84
        $region42: #{tpu_custom_call.1} parent=31 // pred_check_branch
          %195 = sbr.rel (%p193) target = $region44
        $region43: #{tpu_custom_call.1} parent=31 // pred_region
          %196 = dma.done [#allocation6], 64
        $region44: #{tpu_custom_call.1} parent=31 // pred_fallthru
          _
        %s197 = sand.u32 %s29, 1
        %s198 = scalar_lea.sflag [#allocation3], %s197
        %s199 = sand.u32 %s29, 1
        %s200 = smul.addr %s199, 8
        %s201 = scalar_lea.vmem [#allocation2], %s200
        %p202 = pneg %p42
        %p203 = pneg %p39
        %p204 = pneg %p63
        %p205 = pneg %p60
        %p206 = pneg %p84
        %p207 = pneg %p81
        %p208 = pneg %p110
        %p209 = pneg %p107
        %s210 = sand.u32 %s97, 1
        %s211 = scalar_lea.sflag [#allocation4], %s210
        %s212 = sand.u32 %s97, 1
        %s213 = smul.addr %s212, 8
        %s214 = scalar_lea.vmem [#allocation8], %s213
        %v215 = vld [vmem:[%s184] sm:$0xff]
        %v216 = vld [vmem:[#allocation5] sm:$0xff]
        %v217 = vld [vmem:[#allocation5 + $0x8] sm:$0xff]
        %v218 = vld [vmem:[#allocation5 + $0x10] sm:$0xff]
        %v219 = vld [vmem:[#allocation5 + $0x18] sm:$0xff]
        %v220 = vld [vmem:[#allocation7] sm:$0x1]
        %v222 = vlaneseq
        %v223 = vshrl.u32 %v222, 7
        %v224 = vsub.s32 0, %v223
        %v225 = vrot.slane %v220, %v224
        %vm227 = vcmask 261120
        %v229 = vsel %vm227, %v215, 0
        %231 = vmatprep.subr.mxu0 0.0
        %232 = vmatpush1.msra.mxu0 0.0
        %233 = vmatprep.subr.mxu0 0.0
        %234 = vmatpush1.msra.mxu0 0.0
        %235 = vmatprep.subr.mxu0 0.0
        %236 = vmatpush1.msra.mxu0 0.0
        %237 = vmatprep.subr.mxu0 0.0
        %238 = vmatpush1.msra.mxu0 0.0
        %239 = vmatprep.subr.mxu0 0.0
        %240 = vmatpush1.msra.mxu0 0.0
        %241 = vmatprep.subr.mxu0 0.0
        %242 = vmatpush1.msra.mxu0 0.0
        %243 = vmatprep.subr.mxu0 0.0
        %244 = vmatpush1.msra.mxu0 0.0
        %245 = vmatprep.subr.mxu0 0.0
        %246 = vmatpush1.msra.mxu0 0.0
        %247 = vmatprep.subr.mxu0 0.0
        %248 = vmatpush1.msra.mxu0 0.0
        %249 = vmatprep.subr.mxu0 0.0
        %250 = vmatpush1.msra.mxu0 0.0
        %251 = vmatprep.subr.mxu0 0.0
        %252 = vmatpush1.msra.mxu0 0.0
        %253 = vmatprep.subr.mxu0 0.0
        %254 = vmatpush1.msra.mxu0 0.0
        %255 = vmatprep.subr.mxu0 0.0
        %256 = vmatpush1.msra.mxu0 %v219
        %257 = vmatprep.subr.mxu0 0.0
        %258 = vmatpush1.msra.mxu0 %v218
        %259 = vmatprep.subr.mxu0 0.0
        %260 = vmatpush1.msra.mxu0 %v217
        %261 = vmatprep.subr.mxu0 0.0
        %262 = vmatpush1.msra.mxu0 %v216
        %263 = vmatprep.subr.mxu0 0.0
        %264 = vmatpush2.msra.mxu0 0.0
        %265 = vmatprep.subr.mxu0 0.0
        %266 = vmatpush2.msra.mxu0 0.0
        %267 = vmatprep.subr.mxu0 0.0
        %268 = vmatpush2.msra.mxu0 0.0
        %269 = vmatprep.subr.mxu0 0.0
        %270 = vmatpush2.msra.mxu0 0.0
        %271 = vmatprep.subr.mxu0 0.0
        %272 = vmatpush2.msra.mxu0 0.0
        %273 = vmatprep.subr.mxu0 0.0
        %274 = vmatpush2.msra.mxu0 0.0
        %275 = vmatprep.subr.mxu0 0.0
        %276 = vmatpush2.msra.mxu0 0.0
        %277 = vmatprep.subr.mxu0 0.0
        %278 = vmatpush2.msra.mxu0 0.0
        %279 = vmatprep.subr.mxu0 0.0
        %280 = vmatpush2.msra.mxu0 0.0
        %281 = vmatprep.subr.mxu0 0.0
        %282 = vmatpush2.msra.mxu0 0.0
        %283 = vmatprep.subr.mxu0 0.0
        %284 = vmatpush2.msra.mxu0 0.0
        %285 = vmatprep.subr.mxu0 0.0
        %286 = vmatpush2.msra.mxu0 0.0
        %287 = vmatprep.subr.mxu0 0.0
        %288 = vmatpush2.msra.mxu0 0.0
        %289 = vmatprep.subr.mxu0 0.0
        %290 = vmatpush2.msra.mxu0 0.0
        %291 = vmatprep.subr.mxu0 0.0
        %292 = vmatpush2.msra.mxu0 0.0
        %293 = vmatprep.subr.mxu0 0.0
        %294 = vmatpush2.msra.mxu0 0.0
        %295 = vmatprep.mubr.f32.mxu0 0.0
        %296 = vmatmul.mubr.f32.gmra.mxu0 %v229
        %v297 = vpop.f32.mrf.mxu0
        %v298 = vadd.f32 %v225, %v297
        %v299 = vpop.f32.mrf.mxu0
        %300 = vdwg.mxu0
        %v301 = vmax.f32 %v298, 0.0
        %s302 = scalar_lea.vmem [#allocation5], 128
        %v303 = vld [vmem:[%s302] sm:$0xff]
        %v304 = vld [vmem:[%s302 + $0x8] sm:$0xff]
        %v305 = vld [vmem:[%s302 + $0x10] sm:$0xff]
        %v306 = vld [vmem:[%s302 + $0x18] sm:$0xff]
        %v307 = vld [vmem:[%s302 + $0x20] sm:$0xff]
        %v308 = vld [vmem:[%s302 + $0x28] sm:$0xff]
        %v309 = vld [vmem:[%s302 + $0x30] sm:$0xff]
        %v310 = vld [vmem:[%s302 + $0x38] sm:$0xff]
        %v311 = vld [vmem:[%s302 + $0x40] sm:$0xff]
        %v312 = vld [vmem:[%s302 + $0x48] sm:$0xff]
        %v313 = vld [vmem:[%s302 + $0x50] sm:$0xff]
        %v314 = vld [vmem:[%s302 + $0x58] sm:$0xff]
        %v315 = vld [vmem:[%s302 + $0x60] sm:$0xff]
        %v316 = vld [vmem:[%s302 + $0x68] sm:$0xff]
        %v317 = vld [vmem:[%s302 + $0x70] sm:$0xff]
        %v318 = vld [vmem:[%s302 + $0x78] sm:$0xff]
        %s319 = scalar_lea.vmem [#allocation7], 1
        %v320 = vld [vmem:[%s319] sm:$0x1]
        %v322 = vlaneseq
        %v323 = vshrl.u32 %v322, 7
        %v324 = vsub.s32 0, %v323
        %v325 = vrot.slane %v320, %v324
        %327 = vmatprep.subr.mxu0 0.0
        %328 = vmatpush1.msra.mxu0 %v318
        %329 = vmatprep.subr.mxu0 0.0
        %330 = vmatpush1.msra.mxu0 %v317
        %331 = vmatprep.subr.mxu0 0.0
        %332 = vmatpush1.msra.mxu0 %v316
        %333 = vmatprep.subr.mxu0 0.0
        %334 = vmatpush1.msra.mxu0 %v315
        %335 = vmatprep.subr.mxu0 0.0
        %336 = vmatpush1.msra.mxu0 %v314
        %337 = vmatprep.subr.mxu0 0.0
        %338 = vmatpush1.msra.mxu0 %v313
        %339 = vmatprep.subr.mxu0 0.0
        %340 = vmatpush1.msra.mxu0 %v312
        %341 = vmatprep.subr.mxu0 0.0
        %342 = vmatpush1.msra.mxu0 %v311
        %343 = vmatprep.subr.mxu0 0.0
        %344 = vmatpush1.msra.mxu0 %v310
        %345 = vmatprep.subr.mxu0 0.0
        %346 = vmatpush1.msra.mxu0 %v309
        %347 = vmatprep.subr.mxu0 0.0
        %348 = vmatpush1.msra.mxu0 %v308
        %349 = vmatprep.subr.mxu0 0.0
        %350 = vmatpush1.msra.mxu0 %v307
        %351 = vmatprep.subr.mxu0 0.0
        %352 = vmatpush1.msra.mxu0 %v306
        %353 = vmatprep.subr.mxu0 0.0
        %354 = vmatpush1.msra.mxu0 %v305
        %355 = vmatprep.subr.mxu0 0.0
        %356 = vmatpush1.msra.mxu0 %v304
        %357 = vmatprep.subr.mxu0 0.0
        %358 = vmatpush1.msra.mxu0 %v303
        %359 = vmatprep.subr.mxu0 0.0
        %360 = vmatpush2.msra.mxu0 0.0
        %361 = vmatprep.subr.mxu0 0.0
        %362 = vmatpush2.msra.mxu0 0.0
        %363 = vmatprep.subr.mxu0 0.0
        %364 = vmatpush2.msra.mxu0 0.0
        %365 = vmatprep.subr.mxu0 0.0
        %366 = vmatpush2.msra.mxu0 0.0
        %367 = vmatprep.subr.mxu0 0.0
        %368 = vmatpush2.msra.mxu0 0.0
        %369 = vmatprep.subr.mxu0 0.0
        %370 = vmatpush2.msra.mxu0 0.0
        %371 = vmatprep.subr.mxu0 0.0
        %372 = vmatpush2.msra.mxu0 0.0
        %373 = vmatprep.subr.mxu0 0.0
        %374 = vmatpush2.msra.mxu0 0.0
        %375 = vmatprep.subr.mxu0 0.0
        %376 = vmatpush2.msra.mxu0 0.0
        %377 = vmatprep.subr.mxu0 0.0
        %378 = vmatpush2.msra.mxu0 0.0
        %379 = vmatprep.subr.mxu0 0.0
        %380 = vmatpush2.msra.mxu0 0.0
        %381 = vmatprep.subr.mxu0 0.0
        %382 = vmatpush2.msra.mxu0 0.0
        %383 = vmatprep.subr.mxu0 0.0
        %384 = vmatpush2.msra.mxu0 0.0
        %385 = vmatprep.subr.mxu0 0.0
        %386 = vmatpush2.msra.mxu0 0.0
        %387 = vmatprep.subr.mxu0 0.0
        %388 = vmatpush2.msra.mxu0 0.0
        %389 = vmatprep.subr.mxu0 0.0
        %390 = vmatpush2.msra.mxu0 0.0
        %391 = vmatprep.mubr.f32.mxu0 0.0
        %392 = vmatmul.mubr.f32.gmra.mxu0 %v301
        %v393 = vpop.f32.mrf.mxu0
        %v394 = vadd.f32 %v325, %v393
        %v395 = vpop.f32.mrf.mxu0
        %396 = vdwg.mxu0
        %v397 = vmax.f32 %v394, 0.0
        %s398 = scalar_lea.vmem [#allocation5], 256
        %v399 = vld [vmem:[%s398] sm:$0xff]
        %v400 = vld [vmem:[%s398 + $0x8] sm:$0xff]
        %v401 = vld [vmem:[%s398 + $0x10] sm:$0xff]
        %v402 = vld [vmem:[%s398 + $0x18] sm:$0xff]
        %v403 = vld [vmem:[%s398 + $0x20] sm:$0xff]
        %v404 = vld [vmem:[%s398 + $0x28] sm:$0xff]
        %v405 = vld [vmem:[%s398 + $0x30] sm:$0xff]
        %v406 = vld [vmem:[%s398 + $0x38] sm:$0xff]
        %v407 = vld [vmem:[%s398 + $0x40] sm:$0xff]
        %v408 = vld [vmem:[%s398 + $0x48] sm:$0xff]
        %v409 = vld [vmem:[%s398 + $0x50] sm:$0xff]
        %v410 = vld [vmem:[%s398 + $0x58] sm:$0xff]
        %v411 = vld [vmem:[%s398 + $0x60] sm:$0xff]
        %v412 = vld [vmem:[%s398 + $0x68] sm:$0xff]
        %v413 = vld [vmem:[%s398 + $0x70] sm:$0xff]
        %v414 = vld [vmem:[%s398 + $0x78] sm:$0xff]
        %s415 = scalar_lea.vmem [#allocation7], 2
        %v416 = vld [vmem:[%s415] sm:$0x1]
        %v418 = vlaneseq
        %v419 = vshrl.u32 %v418, 7
        %v420 = vsub.s32 0, %v419
        %v421 = vrot.slane %v416, %v420
        %423 = vmatprep.subr.mxu0 0.0
        %424 = vmatpush1.msra.mxu0 %v414
        %425 = vmatprep.subr.mxu0 0.0
        %426 = vmatpush1.msra.mxu0 %v413
        %427 = vmatprep.subr.mxu0 0.0
        %428 = vmatpush1.msra.mxu0 %v412
        %429 = vmatprep.subr.mxu0 0.0
        %430 = vmatpush1.msra.mxu0 %v411
        %431 = vmatprep.subr.mxu0 0.0
        %432 = vmatpush1.msra.mxu0 %v410
        %433 = vmatprep.subr.mxu0 0.0
        %434 = vmatpush1.msra.mxu0 %v409
        %435 = vmatprep.subr.mxu0 0.0
        %436 = vmatpush1.msra.mxu0 %v408
        %437 = vmatprep.subr.mxu0 0.0
        %438 = vmatpush1.msra.mxu0 %v407
        %439 = vmatprep.subr.mxu0 0.0
        %440 = vmatpush1.msra.mxu0 %v406
        %441 = vmatprep.subr.mxu0 0.0
        %442 = vmatpush1.msra.mxu0 %v405
        %443 = vmatprep.subr.mxu0 0.0
        %444 = vmatpush1.msra.mxu0 %v404
        %445 = vmatprep.subr.mxu0 0.0
        %446 = vmatpush1.msra.mxu0 %v403
        %447 = vmatprep.subr.mxu0 0.0
        %448 = vmatpush1.msra.mxu0 %v402
        %449 = vmatprep.subr.mxu0 0.0
        %450 = vmatpush1.msra.mxu0 %v401
        %451 = vmatprep.subr.mxu0 0.0
        %452 = vmatpush1.msra.mxu0 %v400
        %453 = vmatprep.subr.mxu0 0.0
        %454 = vmatpush1.msra.mxu0 %v399
        %455 = vmatprep.subr.mxu0 0.0
        %456 = vmatpush2.msra.mxu0 0.0
        %457 = vmatprep.subr.mxu0 0.0
        %458 = vmatpush2.msra.mxu0 0.0
        %459 = vmatprep.subr.mxu0 0.0
        %460 = vmatpush2.msra.mxu0 0.0
        %461 = vmatprep.subr.mxu0 0.0
        %462 = vmatpush2.msra.mxu0 0.0
        %463 = vmatprep.subr.mxu0 0.0
        %464 = vmatpush2.msra.mxu0 0.0
        %465 = vmatprep.subr.mxu0 0.0
        %466 = vmatpush2.msra.mxu0 0.0
        %467 = vmatprep.subr.mxu0 0.0
        %468 = vmatpush2.msra.mxu0 0.0
        %469 = vmatprep.subr.mxu0 0.0
        %470 = vmatpush2.msra.mxu0 0.0
        %471 = vmatprep.subr.mxu0 0.0
        %472 = vmatpush2.msra.mxu0 0.0
        %473 = vmatprep.subr.mxu0 0.0
        %474 = vmatpush2.msra.mxu0 0.0
        %475 = vmatprep.subr.mxu0 0.0
        %476 = vmatpush2.msra.mxu0 0.0
        %477 = vmatprep.subr.mxu0 0.0
        %478 = vmatpush2.msra.mxu0 0.0
        %479 = vmatprep.subr.mxu0 0.0
        %480 = vmatpush2.msra.mxu0 0.0
        %481 = vmatprep.subr.mxu0 0.0
        %482 = vmatpush2.msra.mxu0 0.0
        %483 = vmatprep.subr.mxu0 0.0
        %484 = vmatpush2.msra.mxu0 0.0
        %485 = vmatprep.subr.mxu0 0.0
        %486 = vmatpush2.msra.mxu0 0.0
        %487 = vmatprep.mubr.f32.mxu0 0.0
        %488 = vmatmul.mubr.f32.gmra.mxu0 %v397
        %v489 = vpop.f32.mrf.mxu0
        %v490 = vadd.f32 %v421, %v489
        %v491 = vpop.f32.mrf.mxu0
        %492 = vdwg.mxu0
        %v493 = vmax.f32 %v490, 0.0
        %s494 = scalar_lea.vmem [#allocation5], 384
        %v495 = vld [vmem:[%s494] sm:$0xff]
        %v496 = vld [vmem:[%s494 + $0x8] sm:$0xff]
        %v497 = vld [vmem:[%s494 + $0x10] sm:$0xff]
        %v498 = vld [vmem:[%s494 + $0x18] sm:$0xff]
        %v499 = vld [vmem:[%s494 + $0x20] sm:$0xff]
        %v500 = vld [vmem:[%s494 + $0x28] sm:$0xff]
        %v501 = vld [vmem:[%s494 + $0x30] sm:$0xff]
        %v502 = vld [vmem:[%s494 + $0x38] sm:$0xff]
        %v503 = vld [vmem:[%s494 + $0x40] sm:$0xff]
        %v504 = vld [vmem:[%s494 + $0x48] sm:$0xff]
        %v505 = vld [vmem:[%s494 + $0x50] sm:$0xff]
        %v506 = vld [vmem:[%s494 + $0x58] sm:$0xff]
        %v507 = vld [vmem:[%s494 + $0x60] sm:$0xff]
        %v508 = vld [vmem:[%s494 + $0x68] sm:$0xff]
        %v509 = vld [vmem:[%s494 + $0x70] sm:$0xff]
        %v510 = vld [vmem:[%s494 + $0x78] sm:$0xff]
        %s511 = scalar_lea.vmem [#allocation7], 3
        %v512 = vld [vmem:[%s511] sm:$0x1]
        %v514 = vlaneseq
        %v515 = vshrl.u32 %v514, 7
        %v516 = vsub.s32 0, %v515
        %v517 = vrot.slane %v512, %v516
        %519 = vmatprep.subr.mxu0 0.0
        %520 = vmatpush1.msra.mxu0 %v510
        %521 = vmatprep.subr.mxu0 0.0
        %522 = vmatpush1.msra.mxu0 %v509
        %523 = vmatprep.subr.mxu0 0.0
        %524 = vmatpush1.msra.mxu0 %v508
        %525 = vmatprep.subr.mxu0 0.0
        %526 = vmatpush1.msra.mxu0 %v507
        %527 = vmatprep.subr.mxu0 0.0
        %528 = vmatpush1.msra.mxu0 %v506
        %529 = vmatprep.subr.mxu0 0.0
        %530 = vmatpush1.msra.mxu0 %v505
        %531 = vmatprep.subr.mxu0 0.0
        %532 = vmatpush1.msra.mxu0 %v504
        %533 = vmatprep.subr.mxu0 0.0
        %534 = vmatpush1.msra.mxu0 %v503
        %535 = vmatprep.subr.mxu0 0.0
        %536 = vmatpush1.msra.mxu0 %v502
        %537 = vmatprep.subr.mxu0 0.0
        %538 = vmatpush1.msra.mxu0 %v501
        %539 = vmatprep.subr.mxu0 0.0
        %540 = vmatpush1.msra.mxu0 %v500
        %541 = vmatprep.subr.mxu0 0.0
        %542 = vmatpush1.msra.mxu0 %v499
        %543 = vmatprep.subr.mxu0 0.0
        %544 = vmatpush1.msra.mxu0 %v498
        %545 = vmatprep.subr.mxu0 0.0
        %546 = vmatpush1.msra.mxu0 %v497
        %547 = vmatprep.subr.mxu0 0.0
        %548 = vmatpush1.msra.mxu0 %v496
        %549 = vmatprep.subr.mxu0 0.0
        %550 = vmatpush1.msra.mxu0 %v495
        %551 = vmatprep.subr.mxu0 0.0
        %552 = vmatpush2.msra.mxu0 0.0
        %553 = vmatprep.subr.mxu0 0.0
        %554 = vmatpush2.msra.mxu0 0.0
        %555 = vmatprep.subr.mxu0 0.0
        %556 = vmatpush2.msra.mxu0 0.0
        %557 = vmatprep.subr.mxu0 0.0
        %558 = vmatpush2.msra.mxu0 0.0
        %559 = vmatprep.subr.mxu0 0.0
        %560 = vmatpush2.msra.mxu0 0.0
        %561 = vmatprep.subr.mxu0 0.0
        %562 = vmatpush2.msra.mxu0 0.0
        %563 = vmatprep.subr.mxu0 0.0
        %564 = vmatpush2.msra.mxu0 0.0
        %565 = vmatprep.subr.mxu0 0.0
        %566 = vmatpush2.msra.mxu0 0.0
        %567 = vmatprep.subr.mxu0 0.0
        %568 = vmatpush2.msra.mxu0 0.0
        %569 = vmatprep.subr.mxu0 0.0
        %570 = vmatpush2.msra.mxu0 0.0
        %571 = vmatprep.subr.mxu0 0.0
        %572 = vmatpush2.msra.mxu0 0.0
        %573 = vmatprep.subr.mxu0 0.0
        %574 = vmatpush2.msra.mxu0 0.0
        %575 = vmatprep.subr.mxu0 0.0
        %576 = vmatpush2.msra.mxu0 0.0
        %577 = vmatprep.subr.mxu0 0.0
        %578 = vmatpush2.msra.mxu0 0.0
        %579 = vmatprep.subr.mxu0 0.0
        %580 = vmatpush2.msra.mxu0 0.0
        %581 = vmatprep.subr.mxu0 0.0
        %582 = vmatpush2.msra.mxu0 0.0
        %583 = vmatprep.mubr.f32.mxu0 0.0
        %584 = vmatmul.mubr.f32.gmra.mxu0 %v493
        %v585 = vpop.f32.mrf.mxu0
        %v586 = vadd.f32 %v517, %v585
        %v587 = vpop.f32.mrf.mxu0
        %588 = vdwg.mxu0
        %vm589 = vcmask 80896
        %590 = vst.msk [vmem:[%s214] sm:$0xff] %vm589, %v586
        %s591 = sand.u32 %s97, 1
        %s592 = scalar_lea.sflag [#allocation4], %s591
        %s593 = sand.u32 %s97, 1
        %s594 = smul.addr %s593, 8
        %s595 = scalar_lea.vmem [#allocation8], %s594
        // Predicated region
        $region45: #{tpu_custom_call.1} parent=31 // pred_check
          %p596 = pneg %p107
        $region46: #{tpu_custom_call.1} parent=31 // pred_check_branch
          %598 = sbr.rel (%p596) target = $region48
        $region47: #{tpu_custom_call.1} parent=31 // pred_region
          %s600 = ssub.s32 128, 128
          %601 = vsyncadd %s592, %s600
          %s602 = smul.addr %s21, 128
          %s603 = scalar_lea.hbm %s3, %s602
          %s605 = sshll.u32 %s595, 4
          %s606 = int_to_ptr.vmem [resolvable:$true] %s605
          %608 = dma.vmem_to_hbm [thread:$0]  %s606, 128, %s603, %s592
        $region48: #{tpu_custom_call.1} parent=31 // pred_fallthru
          _
      $region32: #{tpu_custom_call.1} parent=5 // pred_fallthru
        _
      %p609 = scmp.le.s32.totalorder 2, %s16
      // Predicated region
      $region49: #{tpu_custom_call.1} parent=5 // pred_check
        %p610 = pneg %p609
      $region50: #{tpu_custom_call.1} parent=5 // pred_check_branch
        %612 = sbr.rel (%p610) target = $region52
      $region51: #{tpu_custom_call.1} parent=5 // pred_region
        %s613 = ssub.s32 %s16, 2
        // Predicated region
        $region53: #{tpu_custom_call.1} parent=51 // pred_check
          %p614 = pneg %p113
        $region54: #{tpu_custom_call.1} parent=51 // pred_check_branch
          %616 = sbr.rel (%p614) target = $region56
        $region55: #{tpu_custom_call.1} parent=51 // pred_region
          %s617 = sand.u32 %s98, 1
          %s618 = scalar_lea.sflag [#allocation4], %s617
          %s619 = sand.u32 %s98, 1
          %s620 = smul.addr %s619, 8
          %s621 = scalar_lea.vmem [#allocation8], %s620
          %622 = dma.done %s618, 128
        $region56: #{tpu_custom_call.1} parent=51 // pred_fallthru
          _
      $region52: #{tpu_custom_call.1} parent=5 // pred_fallthru
        _
    $region6: #{tpu_custom_call.1} parent=1 // loop_footer
      %s20 = sadd.s32 1, %s16
    $region7: #{tpu_custom_call.1} parent=1 // loop_footer_branch
      %15 = sbr.rel target = $region3
    $region8: #{tpu_custom_call.1} parent=1 // loop_exit
      _
    %623 = vsyncpa [#allocation3], 1
    %s624 = scalar_lea.sflag [#allocation3], 1
    %625 = vsyncpa %s624, 1
    %626 = vsyncpa [#allocation6], 1
    %627 = vsyncpa [#allocation4], 1
    %s628 = scalar_lea.sflag [#allocation4], 1
    %629 = vsyncpa %s628, 1

</llo_original>
